<compile_context>
chip_gen: v7x
topology: tpu7x:2x2x1
jax: 0.10.0
libtpu: 0.0.40
codegen_flags: <defaults>
</compile_context>

<pallas_src>
import jax
import jax.numpy as jnp
from jax.experimental import pallas as pl
from jax.experimental.pallas import tpu as pltpu

PATCH = 8  # synthetic patch size


def _round_up(x, m):
    return (x + m - 1) // m * m


def _encoder_kernel(patches_ref, we_ref, be_ref, g_ref, bta_ref,
                    w1_ref, b1_ref, w2_ref, b2_ref, out_ref):
    """One M-tile of the encoder block.

    patches_ref: (TILE_M, P)   bf16 patch tokens (P = 192, full-K block)
    we_ref:      (P, D)        bf16 patch-embedding weight
    be_ref:      (1, D)        f32 patch-embedding bias
    g_ref/bta_ref: (1, D)      f32 layernorm gamma / beta
    w1_ref/b1_ref: (D, Dh) bf16 / (1, Dh) f32  MLP in-projection
    w2_ref/b2_ref: (Dh, D) bf16 / (1, D) f32   MLP out-projection
    out_ref:     (TILE_M, D)   bf16 output tokens
    """
    # Patch embedding (bf16 MXU matmul, f32 accumulation).
    tok = jnp.dot(patches_ref[...], we_ref[...],
                  preferred_element_type=jnp.float32)
    tok = tok + be_ref[...]                                      # [TILE_M, D] f32

    # LayerNorm over the embedding dim (centered form, f32).
    mu = jnp.mean(tok, axis=-1, keepdims=True)
    d = tok - mu
    var = jnp.mean(d * d, axis=-1, keepdims=True)
    h = d * jax.lax.rsqrt(var + 1e-6)
    h = h * g_ref[...] + bta_ref[...]

    # GELU MLP (bf16 matmuls + bf16 GELU, f32 accumulation) + residual.
    m = jnp.dot(h.astype(jnp.bfloat16), w1_ref[...],
                preferred_element_type=jnp.float32) + b1_ref[...]
    m = jax.nn.gelu(m.astype(jnp.bfloat16), approximate=True)   # tanh -> EUP
    m = jnp.dot(m, w2_ref[...],
                preferred_element_type=jnp.float32) + b2_ref[...]

    out_ref[...] = (tok + m).astype(out_ref.dtype)


def sam2_encoder_forward(x, params, tile_m=512, out_dtype=jnp.bfloat16):
    """Synthetic SAM2 image-encoder forward (as_encoder=True path)."""
    B, C, H, W = x.shape
    Hp, Wp = H // PATCH, W // PATCH
    Np = Hp * Wp
    P = PATCH * PATCH * C
    D = params["w_embed"].shape[1]
    Dh = params["w1"].shape[1]

    # NCHW -> flattened bf16 patch tokens [B*Np, P].  The bf16 cast is fused
    # into the patch-extraction fusion; no K-padding (full-K blocks below).
    patches = x.astype(jnp.bfloat16)
    patches = patches.reshape(B, C, Hp, PATCH, Wp, PATCH)
    patches = patches.transpose(0, 2, 4, 3, 5, 1).reshape(B * Np, P)

    M = B * Np
    TILE_M = min(tile_m, _round_up(M, 16))
    # Guarantee >=2 grid steps when possible so v7x megacore sharding of the
    # "parallel" M axis keeps both TensorCores busy.
    if pl.cdiv(M, TILE_M) < 2 and TILE_M >= 32:
        TILE_M = _round_up(pl.cdiv(TILE_M, 2), 16)
    M_pad = _round_up(M, TILE_M)

    if M_pad != M:
        patches = jnp.pad(patches, ((0, M_pad - M), (0, 0)))

    w_embed = params["w_embed"].astype(jnp.bfloat16)
    w1 = params["w1"].astype(jnp.bfloat16)
    w2 = params["w2"].astype(jnp.bfloat16)

    grid = (M_pad // TILE_M,)
    out = pl.pallas_call(
        _encoder_kernel,
        out_shape=jax.ShapeDtypeStruct((M_pad, D), out_dtype),
        grid_spec=pltpu.PrefetchScalarGridSpec(
            num_scalar_prefetch=0,
            grid=grid,
            in_specs=[
                pl.BlockSpec((TILE_M, P), lambda i: (i, 0)),    # patches (full K)
                pl.BlockSpec((P, D), lambda i: (0, 0)),         # w_embed
                pl.BlockSpec((1, D), lambda i: (0, 0)),         # b_embed
                pl.BlockSpec((1, D), lambda i: (0, 0)),         # ln gamma
                pl.BlockSpec((1, D), lambda i: (0, 0)),         # ln beta
                pl.BlockSpec((D, Dh), lambda i: (0, 0)),        # w1
                pl.BlockSpec((1, Dh), lambda i: (0, 0)),        # b1
                pl.BlockSpec((Dh, D), lambda i: (0, 0)),        # w2
                pl.BlockSpec((1, D), lambda i: (0, 0)),         # b2
            ],
            out_specs=pl.BlockSpec((TILE_M, D), lambda i: (i, 0)),
        ),
        compiler_params=pltpu.CompilerParams(
            dimension_semantics=("parallel",)),
    )(patches, w_embed, params["b_embed"], params["ln_g"], params["ln_b"],
      w1, params["b1"], w2, params["b2"])

    # [B*Np, D] -> [B, D, Hp, Wp] (NCHW embedding, like get_image_embedding()).
    return out[:M].reshape(B, Hp, Wp, D).transpose(0, 3, 1, 2)


def _encoder_ref(x, params):
    """Pure-JAX reference with the same cast points as the kernel (f32 out)."""
    B, C, H, W = x.shape
    Hp, Wp = H // PATCH, W // PATCH
    Np = Hp * Wp
    P = PATCH * PATCH * C
    D = params["w_embed"].shape[1]

    patches = x.astype(jnp.bfloat16)
    patches = patches.reshape(B, C, Hp, PATCH, Wp, PATCH)
    patches = patches.transpose(0, 2, 4, 3, 5, 1).reshape(B * Np, P)

    tok = jnp.dot(patches, params["w_embed"].astype(jnp.bfloat16),
                  preferred_element_type=jnp.float32) + params["b_embed"]
    mu = jnp.mean(tok, axis=-1, keepdims=True)
    d = tok - mu
    var = jnp.mean(d * d, axis=-1, keepdims=True)
    h = d * jax.lax.rsqrt(var + 1e-6)
    h = h * params["ln_g"] + params["ln_b"]
    m = jnp.dot(h.astype(jnp.bfloat16), params["w1"].astype(jnp.bfloat16),
                preferred_element_type=jnp.float32) + params["b1"]
    m = jax.nn.gelu(m.astype(jnp.bfloat16), approximate=True)
    m = jnp.dot(m, params["w2"].astype(jnp.bfloat16),
                preferred_element_type=jnp.float32) + params["b2"]
    out = tok + m
    return out.reshape(B, Hp, Wp, D).transpose(0, 3, 1, 2)


def make_params(key, C, D=128, Dh=512):
    """Deterministic synthetic encoder parameters (no checkpoint load)."""
    P = PATCH * PATCH * C
    k = jax.random.split(key, 4)
    return {
        "w_embed": jax.random.normal(k[0], (P, D), jnp.float32) * 0.02,
        "b_embed": jnp.zeros((1, D), jnp.float32),
        "ln_g": jnp.ones((1, D), jnp.float32),
        "ln_b": jnp.zeros((1, D), jnp.float32),
        "w1": jax.random.normal(k[1], (D, Dh), jnp.float32) * 0.02,
        "b1": jnp.zeros((1, Dh), jnp.float32),
        "w2": jax.random.normal(k[2], (Dh, D), jnp.float32) * 0.02,
        "b2": jnp.zeros((1, D), jnp.float32),
    }


# TODO(synk): the prompt-decoding path (bbox prompts from polygons ->
# predict_batch mask logits) requires the SAM2 mask decoder checkpoint and is
# not reproduced here.

if __name__ == "__main__":
    key = jax.random.PRNGKey(0)
    kx, kp = jax.random.split(key)

    B, C, H, W = 2, 3, 32, 32           # small RGB image batch
    x = jax.random.uniform(kx, (B, C, H, W), jnp.float32)

    params = make_params(kp, C, D=128, Dh=512)

    emb = sam2_encoder_forward(x, params)
    jax.block_until_ready(emb)

    assert emb.shape == (B, 128, H // PATCH, W // PATCH), emb.shape

    ref = _encoder_ref(x, params)
    emb_f32 = emb.astype(jnp.float32)
    assert bool(jnp.all(jnp.isfinite(emb_f32)))
    assert bool(jnp.allclose(emb_f32, ref, atol=2e-2, rtol=2e-2)), (
        float(jnp.max(jnp.abs(emb_f32 - ref))))

    print("KERNEL_OK")
</pallas_src>

<mosaic_0001>
module attributes {stable_mosaic.version = 11 : i64} {
  func.func @_encoder_kernel(%arg0: i32, %arg1: memref<16x192xbf16, #tpu.memory_space<vmem>>, %arg2: memref<192x128xbf16, #tpu.memory_space<vmem>>, %arg3: memref<1x128xf32, #tpu.memory_space<vmem>>, %arg4: memref<1x128xf32, #tpu.memory_space<vmem>>, %arg5: memref<1x128xf32, #tpu.memory_space<vmem>>, %arg6: memref<128x512xbf16, #tpu.memory_space<vmem>>, %arg7: memref<1x512xf32, #tpu.memory_space<vmem>>, %arg8: memref<512x128xbf16, #tpu.memory_space<vmem>>, %arg9: memref<1x128xf32, #tpu.memory_space<vmem>>, %arg10: memref<16x128xbf16, #tpu.memory_space<vmem>>) attributes {dimension_semantics = [#tpu.dimension_semantics<parallel>], iteration_bounds = array<i64: 2>, scalar_prefetch = 0 : i64, scratch_operands = 0 : i64, tpu.core_type = #tpu.core_type<tc>, window_params = [{transform_indices = @transform_0, window_bounds = array<i64: 16, 192>}, {pipeline_mode = #tpu.pipeline_mode<synchronous>, transform_indices = @transform_1, window_bounds = array<i64: 192, 128>}, {pipeline_mode = #tpu.pipeline_mode<synchronous>, transform_indices = @transform_2, window_bounds = array<i64: 1, 128>}, {pipeline_mode = #tpu.pipeline_mode<synchronous>, transform_indices = @transform_3, window_bounds = array<i64: 1, 128>}, {pipeline_mode = #tpu.pipeline_mode<synchronous>, transform_indices = @transform_4, window_bounds = array<i64: 1, 128>}, {pipeline_mode = #tpu.pipeline_mode<synchronous>, transform_indices = @transform_5, window_bounds = array<i64: 128, 512>}, {pipeline_mode = #tpu.pipeline_mode<synchronous>, transform_indices = @transform_6, window_bounds = array<i64: 1, 512>}, {pipeline_mode = #tpu.pipeline_mode<synchronous>, transform_indices = @transform_7, window_bounds = array<i64: 512, 128>}, {pipeline_mode = #tpu.pipeline_mode<synchronous>, transform_indices = @transform_8, window_bounds = array<i64: 1, 128>}, {transform_indices = @transform_9, window_bounds = array<i64: 16, 128>}]} {
    %c0 = arith.constant 0 : index
    %c0_0 = arith.constant 0 : index
    %0 = vector.load %arg1[%c0, %c0_0] : memref<16x192xbf16, #tpu.memory_space<vmem>>, vector<16x192xbf16>
    %c0_1 = arith.constant 0 : index
    %c0_2 = arith.constant 0 : index
    %1 = vector.load %arg2[%c0_1, %c0_2] : memref<192x128xbf16, #tpu.memory_space<vmem>>, vector<192x128xbf16>
    %cst = arith.constant dense<0.000000e+00> : vector<16x128xf32>
    %2 = tpu.matmul %0, %1, %cst {dimension_numbers = #tpu.dot_dimension_numbers<[1], [0], [0], [1], [0, 0, 1, 1], [], []>} : vector<16x192xbf16>, vector<192x128xbf16>, vector<16x128xf32> -> vector<16x128xf32>
    %c0_3 = arith.constant 0 : index
    %c0_4 = arith.constant 0 : index
    %3 = vector.load %arg3[%c0_3, %c0_4] : memref<1x128xf32, #tpu.memory_space<vmem>>, vector<1x128xf32>
    %4 = vector.broadcast %3 : vector<1x128xf32> to vector<16x128xf32>
    %5 = arith.addf %2, %4 : vector<16x128xf32>
    %cst_5 = arith.constant dense<0.000000e+00> : vector<16xf32>
    %6 = vector.multi_reduction <add>, %5, %cst_5 [1] : vector<16x128xf32> to vector<16xf32>
    %7 = vector.shape_cast %6 : vector<16xf32> to vector<16x1xf32>
    %cst_6 = arith.constant 1.280000e+02 : f32
    %8 = vector.broadcast %cst_6 : f32 to vector<16x1xf32>
    %9 = arith.divf %7, %8 : vector<16x1xf32>
    %10 = vector.broadcast %9 : vector<16x1xf32> to vector<16x128xf32>
    %11 = arith.subf %5, %10 : vector<16x128xf32>
    %12 = arith.mulf %11, %11 : vector<16x128xf32>
    %cst_7 = arith.constant dense<0.000000e+00> : vector<16xf32>
    %13 = vector.multi_reduction <add>, %12, %cst_7 [1] : vector<16x128xf32> to vector<16xf32>
    %14 = vector.shape_cast %13 : vector<16xf32> to vector<16x1xf32>
    %cst_8 = arith.constant 1.280000e+02 : f32
    %15 = vector.broadcast %cst_8 : f32 to vector<16x1xf32>
    %16 = arith.divf %14, %15 : vector<16x1xf32>
    %cst_9 = arith.constant 9.99999997E-7 : f32
    %17 = vector.broadcast %cst_9 : f32 to vector<16x1xf32>
    %18 = arith.addf %16, %17 : vector<16x1xf32>
    %19 = math.rsqrt %18 : vector<16x1xf32>
    %20 = vector.broadcast %19 : vector<16x1xf32> to vector<16x128xf32>
    %21 = arith.mulf %11, %20 : vector<16x128xf32>
    %c0_10 = arith.constant 0 : index
    %c0_11 = arith.constant 0 : index
    %22 = vector.load %arg4[%c0_10, %c0_11] : memref<1x128xf32, #tpu.memory_space<vmem>>, vector<1x128xf32>
    %23 = vector.broadcast %22 : vector<1x128xf32> to vector<16x128xf32>
    %24 = arith.mulf %21, %23 : vector<16x128xf32>
    %c0_12 = arith.constant 0 : index
    %c0_13 = arith.constant 0 : index
    %25 = vector.load %arg5[%c0_12, %c0_13] : memref<1x128xf32, #tpu.memory_space<vmem>>, vector<1x128xf32>
    %26 = vector.broadcast %25 : vector<1x128xf32> to vector<16x128xf32>
    %27 = arith.addf %24, %26 : vector<16x128xf32>
    %28 = arith.truncf %27 : vector<16x128xf32> to vector<16x128xbf16>
    %c0_14 = arith.constant 0 : index
    %c0_15 = arith.constant 0 : index
    %29 = vector.load %arg6[%c0_14, %c0_15] : memref<128x512xbf16, #tpu.memory_space<vmem>>, vector<128x512xbf16>
    %cst_16 = arith.constant dense<0.000000e+00> : vector<16x512xf32>
    %30 = tpu.matmul %28, %29, %cst_16 {dimension_numbers = #tpu.dot_dimension_numbers<[1], [0], [0], [1], [0, 0, 1, 1], [], []>} : vector<16x128xbf16>, vector<128x512xbf16>, vector<16x512xf32> -> vector<16x512xf32>
    %c0_17 = arith.constant 0 : index
    %c0_18 = arith.constant 0 : index
    %31 = vector.load %arg7[%c0_17, %c0_18] : memref<1x512xf32, #tpu.memory_space<vmem>>, vector<1x512xf32>
    %32 = vector.broadcast %31 : vector<1x512xf32> to vector<16x512xf32>
    %33 = arith.addf %30, %32 : vector<16x512xf32>
    %34 = arith.truncf %33 : vector<16x512xf32> to vector<16x512xbf16>
    %35 = arith.mulf %34, %34 : vector<16x512xbf16>
    %36 = arith.mulf %34, %35 : vector<16x512xbf16>
    %cst_19 = arith.constant 4.467770e-02 : bf16
    %37 = vector.broadcast %cst_19 : bf16 to vector<16x512xbf16>
    %38 = arith.mulf %37, %36 : vector<16x512xbf16>
    %39 = arith.addf %34, %38 : vector<16x512xbf16>
    %cst_20 = arith.constant 7.968750e-01 : bf16
    %40 = vector.broadcast %cst_20 : bf16 to vector<16x512xbf16>
    %41 = arith.mulf %40, %39 : vector<16x512xbf16>
    %42 = math.tanh %41 : vector<16x512xbf16>
    %cst_21 = arith.constant 1.000000e+00 : bf16
    %43 = vector.broadcast %cst_21 : bf16 to vector<16x512xbf16>
    %44 = arith.addf %43, %42 : vector<16x512xbf16>
    %cst_22 = arith.constant 5.000000e-01 : bf16
    %45 = vector.broadcast %cst_22 : bf16 to vector<16x512xbf16>
    %46 = arith.mulf %45, %44 : vector<16x512xbf16>
    %47 = arith.mulf %34, %46 : vector<16x512xbf16>
    %c0_23 = arith.constant 0 : index
    %c0_24 = arith.constant 0 : index
    %48 = vector.load %arg8[%c0_23, %c0_24] : memref<512x128xbf16, #tpu.memory_space<vmem>>, vector<512x128xbf16>
    %cst_25 = arith.constant dense<0.000000e+00> : vector<16x128xf32>
    %49 = tpu.matmul %47, %48, %cst_25 {dimension_numbers = #tpu.dot_dimension_numbers<[1], [0], [0], [1], [0, 0, 1, 1], [], []>} : vector<16x512xbf16>, vector<512x128xbf16>, vector<16x128xf32> -> vector<16x128xf32>
    %c0_26 = arith.constant 0 : index
    %c0_27 = arith.constant 0 : index
    %50 = vector.load %arg9[%c0_26, %c0_27] : memref<1x128xf32, #tpu.memory_space<vmem>>, vector<1x128xf32>
    %51 = vector.broadcast %50 : vector<1x128xf32> to vector<16x128xf32>
    %52 = arith.addf %49, %51 : vector<16x128xf32>
    %53 = arith.addf %5, %52 : vector<16x128xf32>
    %54 = arith.truncf %53 : vector<16x128xf32> to vector<16x128xbf16>
    %c0_28 = arith.constant 0 : index
    %c0_29 = arith.constant 0 : index
    %55 = vector.load %arg10[%c0_28, %c0_29] : memref<16x128xbf16, #tpu.memory_space<vmem>>, vector<16x128xbf16>
    tpu.vector_store %arg10[%c0_28, %c0_29], %54 {strides = array<i32>} : memref<16x128xbf16, #tpu.memory_space<vmem>>, vector<16x128xbf16>,
    return
  }
  func.func @transform_0(%arg0: i32) -> (i32, i32) {
    %c0_i32 = arith.constant 0 : i32
    %c0_i32_0 = arith.constant 0 : i32
    return %arg0, %c0_i32 : i32, i32
  }
  func.func @transform_1(%arg0: i32) -> (i32, i32) {
    %c0_i32 = arith.constant 0 : i32
    %c0_i32_0 = arith.constant 0 : i32
    %c0_i32_1 = arith.constant 0 : i32
    return %c0_i32, %c0_i32_0 : i32, i32
  }
  func.func @transform_2(%arg0: i32) -> (i32, i32) {
    %c0_i32 = arith.constant 0 : i32
    %c0_i32_0 = arith.constant 0 : i32
    %c0_i32_1 = arith.constant 0 : i32
    return %c0_i32, %c0_i32_0 : i32, i32
  }
  func.func @transform_3(%arg0: i32) -> (i32, i32) {
    %c0_i32 = arith.constant 0 : i32
    %c0_i32_0 = arith.constant 0 : i32
    %c0_i32_1 = arith.constant 0 : i32
    return %c0_i32, %c0_i32_0 : i32, i32
  }
  func.func @transform_4(%arg0: i32) -> (i32, i32) {
    %c0_i32 = arith.constant 0 : i32
    %c0_i32_0 = arith.constant 0 : i32
    %c0_i32_1 = arith.constant 0 : i32
    return %c0_i32, %c0_i32_0 : i32, i32
  }
  func.func @transform_5(%arg0: i32) -> (i32, i32) {
    %c0_i32 = arith.constant 0 : i32
    %c0_i32_0 = arith.constant 0 : i32
    %c0_i32_1 = arith.constant 0 : i32
    return %c0_i32, %c0_i32_0 : i32, i32
  }
  func.func @transform_6(%arg0: i32) -> (i32, i32) {
    %c0_i32 = arith.constant 0 : i32
    %c0_i32_0 = arith.constant 0 : i32
    %c0_i32_1 = arith.constant 0 : i32
    return %c0_i32, %c0_i32_0 : i32, i32
  }
  func.func @transform_7(%arg0: i32) -> (i32, i32) {
    %c0_i32 = arith.constant 0 : i32
    %c0_i32_0 = arith.constant 0 : i32
    %c0_i32_1 = arith.constant 0 : i32
    return %c0_i32, %c0_i32_0 : i32, i32
  }
  func.func @transform_8(%arg0: i32) -> (i32, i32) {
    %c0_i32 = arith.constant 0 : i32
    %c0_i32_0 = arith.constant 0 : i32
    %c0_i32_1 = arith.constant 0 : i32
    return %c0_i32, %c0_i32_0 : i32, i32
  }
  func.func @transform_9(%arg0: i32) -> (i32, i32) {
    %c0_i32 = arith.constant 0 : i32
    %c0_i32_0 = arith.constant 0 : i32
    return %arg0, %c0_i32 : i32, i32
  }
}

</mosaic_0001>

<llo_original>
// kernel: tpu_custom_call.1
$region0: #{tpu_custom_call.1}
  #allocation0 [shape = 'u32[]', space=smem, size = 0x4, offset = 0x4, fixed_abs, tag = 'smem constant byte address 0x4 - core index']
  #allocation1 [shape = 'u32[144,128]{1,0:T(1,128)}', space=vmem, size = 0x12000, scoped, tag = 'internal scratch']
  %s0 = inlined_call_operand.hbm [shape: bf16[32,192], index: 0, kind: input, shape index: {}]
  %s1 = inlined_call_operand.hbm [shape: bf16[192,128], index: 1, kind: input, shape index: {}]
  %s2 = inlined_call_operand.vmem [shape: f32[1,128], index: 2, kind: input, shape index: {}]
  %s3 = inlined_call_operand.vmem [shape: f32[1,128], index: 3, kind: input, shape index: {}]
  %s4 = inlined_call_operand.vmem [shape: f32[1,128], index: 4, kind: input, shape index: {}]
  %s5 = inlined_call_operand.hbm [shape: bf16[128,512], index: 5, kind: input, shape index: {}]
  %s6 = inlined_call_operand.vmem [shape: f32[1,512], index: 6, kind: input, shape index: {}]
  %s7 = inlined_call_operand.hbm [shape: bf16[512,128], index: 7, kind: input, shape index: {}]
  %s8 = inlined_call_operand.vmem [shape: f32[1,128], index: 8, kind: input, shape index: {}]
  %s9 = inlined_call_operand.hbm [shape: bf16[32,128], index: 9, kind: output, shape index: {}]
  %s10 = sld [smem:[#allocation0]]
  $region85: #{tpu_custom_call.1} parent=0
    _
  %s12 = ssub.s32 1, %s10
  %s13 = scalar_select 0, %s12, %s10
  $region1: #{tpu_custom_call.1} parent=0
    #allocation2 [shape = 'u8[16384]{0}', space=vmem, size = 0x4000, scoped, tag = 'input window, operand 0']
    #allocation3 [shape = 's32[2]{0}', space=sflag, size = 0x8, scoped, tag = 'scoped memory for tpu_custom_call.1']
    #allocation4 [shape = 's32[2]{0}', space=sflag, size = 0x8, scoped, tag = 'scoped memory for tpu_custom_call.1']
    #allocation5 [shape = 'u8[49152]{0}', space=vmem, size = 0xc000, scoped, tag = 'input window, operand 1, single buffered']
    #allocation6 [shape = 's32[1]{0}', space=sflag, size = 0x4, scoped, tag = 'scoped memory for tpu_custom_call.1']
    #allocation7 [shape = 'u8[131072]{0}', space=vmem, size = 0x20000, scoped, tag = 'input window, operand 5, single buffered']
    #allocation8 [shape = 'u8[131072]{0}', space=vmem, size = 0x20000, scoped, tag = 'input window, operand 7, single buffered']
    #allocation9 [shape = 's32[1]{0}', space=sflag, size = 0x4, scoped, tag = 'scoped memory for tpu_custom_call.1']
    #allocation10 [shape = 'u8[8192]{0}', space=vmem, size = 0x2000, scoped, tag = 'output window, operand 0']
    %14 = vsyncpa [#allocation3], 0
    %s15 = scalar_lea.sflag [#allocation3], 1
    %16 = vsyncpa %s15, 0
    %17 = vsyncpa [#allocation6], 0
    %18 = vsyncpa [#allocation9], 0
    %19 = vsyncpa [#allocation4], 0
    %s20 = scalar_lea.sflag [#allocation4], 1
    %21 = vsyncpa %s20, 0
    loop: start=0, step=1, limit=4
    $region2: #{tpu_custom_call.1} parent=1 // loop_pre_header
      _
    $region3: #{tpu_custom_call.1} parent=1 // loop_header
      %s23 = sphi 0, %s27
      %p24 = scmp.ge.s32.totalorder %s23, 4
      %s33 = sphi 0, %s35
      %s36 = sphi 0, %s33
      %s37 = sphi 0, %s36
      %s53 = sphi 0, %s37
      %s57 = sphi 0, %s57
      %s59 = sphi 0, %s57
      %s60 = sphi 0, %s59
      %s74 = sphi 0, %s60
      %s78 = sphi 0, %s78
      %s80 = sphi 0, %s78
      %s81 = sphi 0, %s80
      %s95 = sphi 0, %s81
      %s99 = sphi 0, %s99
      %s101 = sphi 0, %s99
      %s102 = sphi 0, %s101
      %s116 = sphi 0, %s102
      %s120 = sphi 0, %s120
      %s122 = sphi 0, %s120
      %s123 = sphi 0, %s122
      %s137 = sphi 0, %s123
      %s141 = sphi 0, %s141
      %s143 = sphi 0, %s141
      %s144 = sphi 0, %s143
      %s158 = sphi 0, %s144
      %s162 = sphi 0, %s162
      %s164 = sphi 0, %s162
      %s165 = sphi 0, %s164
      %s179 = sphi 0, %s165
      %s183 = sphi 0, %s183
      %s185 = sphi 0, %s183
      %s186 = sphi 0, %s185
      %s200 = sphi 0, %s186
      %s204 = sphi 0, %s204
      %s206 = sphi 0, %s204
      %s207 = sphi 0, %s206
      %s221 = sphi 0, %s207
      %s227 = sphi 0, %s229
      %s230 = sphi 0, %s227
      %s231 = sphi 0, %s230
      %s247 = sphi 0, %s231
    $region4: #{tpu_custom_call.1} parent=1 // loop_header_branch
      %26 = sbr.rel (%p24) target = $region8
    $region5: #{tpu_custom_call.1} parent=1 // loop_body
      %s28 = ssub.s32 %s23, 1
      %s29 = ssub.s32 %s23, 2
      %s30 = sadd.s32 %s23, 1
      %s31 = ssub.s32 %s23, %s30
      %p32 = scmp.eq.s32.totalorder %s31, 0
      %s34 = sadd.s32 %s33, 1
      %s35 = scalar_select %p32, %s33, %s34
      %p38 = pneg %p32
      %p39 = scmp.eq.s32.totalorder %s23, 1
      %p40 = por %p38, %p39
      %p41 = scmp.ne.s32.totalorder %s33, %s36
      %p42 = scmp.eq.s32.totalorder %s23, 0
      %p43 = por %p41, %p42
      %p44 = scmp.ne.s32.totalorder %s33, %s36
      %p45 = scmp.eq.s32.totalorder %s28, 1
      %p46 = por %p44, %p45
      %p47 = scmp.ne.s32.totalorder %s36, %s37
      %p48 = scmp.eq.s32.totalorder %s28, 0
      %p49 = por %p47, %p48
      %p50 = scmp.ne.s32.totalorder %s36, %s37
      %p51 = scmp.eq.s32.totalorder %s29, 1
      %p52 = por %p50, %p51
      %p54 = scmp.ne.s32.totalorder %s37, %s53
      %p55 = scmp.eq.s32.totalorder %s29, 0
      %p56 = por %p54, %p55
      %s58 = sadd.s32 %s57, 1
      %p61 = scmp.eq.s32.totalorder %s23, 1
      %p62 = scmp.ne.s32.totalorder %s57, %s59
      %p63 = scmp.eq.s32.totalorder %s23, 0
      %p64 = por %p62, %p63
      %p65 = scmp.ne.s32.totalorder %s57, %s59
      %p66 = scmp.eq.s32.totalorder %s28, 1
      %p67 = por %p65, %p66
      %p68 = scmp.ne.s32.totalorder %s59, %s60
      %p69 = scmp.eq.s32.totalorder %s28, 0
      %p70 = por %p68, %p69
      %p71 = scmp.ne.s32.totalorder %s59, %s60
      %p72 = scmp.eq.s32.totalorder %s29, 1
      %p73 = por %p71, %p72
      %p75 = scmp.ne.s32.totalorder %s60, %s74
      %p76 = scmp.eq.s32.totalorder %s29, 0
      %p77 = por %p75, %p76
      %s79 = sadd.s32 %s78, 1
      %p82 = scmp.eq.s32.totalorder %s23, 1
      %p83 = scmp.ne.s32.totalorder %s78, %s80
      %p84 = scmp.eq.s32.totalorder %s23, 0
      %p85 = por %p83, %p84
      %p86 = scmp.ne.s32.totalorder %s78, %s80
      %p87 = scmp.eq.s32.totalorder %s28, 1
      %p88 = por %p86, %p87
      %p89 = scmp.ne.s32.totalorder %s80, %s81
      %p90 = scmp.eq.s32.totalorder %s28, 0
      %p91 = por %p89, %p90
      %p92 = scmp.ne.s32.totalorder %s80, %s81
      %p93 = scmp.eq.s32.totalorder %s29, 1
      %p94 = por %p92, %p93
      %p96 = scmp.ne.s32.totalorder %s81, %s95
      %p97 = scmp.eq.s32.totalorder %s29, 0
      %p98 = por %p96, %p97
      %s100 = sadd.s32 %s99, 1
      %p103 = scmp.eq.s32.totalorder %s23, 1
      %p104 = scmp.ne.s32.totalorder %s99, %s101
      %p105 = scmp.eq.s32.totalorder %s23, 0
      %p106 = por %p104, %p105
      %p107 = scmp.ne.s32.totalorder %s99, %s101
      %p108 = scmp.eq.s32.totalorder %s28, 1
      %p109 = por %p107, %p108
      %p110 = scmp.ne.s32.totalorder %s101, %s102
      %p111 = scmp.eq.s32.totalorder %s28, 0
      %p112 = por %p110, %p111
      %p113 = scmp.ne.s32.totalorder %s101, %s102
      %p114 = scmp.eq.s32.totalorder %s29, 1
      %p115 = por %p113, %p114
      %p117 = scmp.ne.s32.totalorder %s102, %s116
      %p118 = scmp.eq.s32.totalorder %s29, 0
      %p119 = por %p117, %p118
      %s121 = sadd.s32 %s120, 1
      %p124 = scmp.eq.s32.totalorder %s23, 1
      %p125 = scmp.ne.s32.totalorder %s120, %s122
      %p126 = scmp.eq.s32.totalorder %s23, 0
      %p127 = por %p125, %p126
      %p128 = scmp.ne.s32.totalorder %s120, %s122
      %p129 = scmp.eq.s32.totalorder %s28, 1
      %p130 = por %p128, %p129
      %p131 = scmp.ne.s32.totalorder %s122, %s123
      %p132 = scmp.eq.s32.totalorder %s28, 0
      %p133 = por %p131, %p132
      %p134 = scmp.ne.s32.totalorder %s122, %s123
      %p135 = scmp.eq.s32.totalorder %s29, 1
      %p136 = por %p134, %p135
      %p138 = scmp.ne.s32.totalorder %s123, %s137
      %p139 = scmp.eq.s32.totalorder %s29, 0
      %p140 = por %p138, %p139
      %s142 = sadd.s32 %s141, 1
      %p145 = scmp.eq.s32.totalorder %s23, 1
      %p146 = scmp.ne.s32.totalorder %s141, %s143
      %p147 = scmp.eq.s32.totalorder %s23, 0
      %p148 = por %p146, %p147
      %p149 = scmp.ne.s32.totalorder %s141, %s143
      %p150 = scmp.eq.s32.totalorder %s28, 1
      %p151 = por %p149, %p150
      %p152 = scmp.ne.s32.totalorder %s143, %s144
      %p153 = scmp.eq.s32.totalorder %s28, 0
      %p154 = por %p152, %p153
      %p155 = scmp.ne.s32.totalorder %s143, %s144
      %p156 = scmp.eq.s32.totalorder %s29, 1
      %p157 = por %p155, %p156
      %p159 = scmp.ne.s32.totalorder %s144, %s158
      %p160 = scmp.eq.s32.totalorder %s29, 0
      %p161 = por %p159, %p160
      %s163 = sadd.s32 %s162, 1
      %p166 = scmp.eq.s32.totalorder %s23, 1
      %p167 = scmp.ne.s32.totalorder %s162, %s164
      %p168 = scmp.eq.s32.totalorder %s23, 0
      %p169 = por %p167, %p168
      %p170 = scmp.ne.s32.totalorder %s162, %s164
      %p171 = scmp.eq.s32.totalorder %s28, 1
      %p172 = por %p170, %p171
      %p173 = scmp.ne.s32.totalorder %s164, %s165
      %p174 = scmp.eq.s32.totalorder %s28, 0
      %p175 = por %p173, %p174
      %p176 = scmp.ne.s32.totalorder %s164, %s165
      %p177 = scmp.eq.s32.totalorder %s29, 1
      %p178 = por %p176, %p177
      %p180 = scmp.ne.s32.totalorder %s165, %s179
      %p181 = scmp.eq.s32.totalorder %s29, 0
      %p182 = por %p180, %p181
      %s184 = sadd.s32 %s183, 1
      %p187 = scmp.eq.s32.totalorder %s23, 1
      %p188 = scmp.ne.s32.totalorder %s183, %s185
      %p189 = scmp.eq.s32.totalorder %s23, 0
      %p190 = por %p188, %p189
      %p191 = scmp.ne.s32.totalorder %s183, %s185
      %p192 = scmp.eq.s32.totalorder %s28, 1
      %p193 = por %p191, %p192
      %p194 = scmp.ne.s32.totalorder %s185, %s186
      %p195 = scmp.eq.s32.totalorder %s28, 0
      %p196 = por %p194, %p195
      %p197 = scmp.ne.s32.totalorder %s185, %s186
      %p198 = scmp.eq.s32.totalorder %s29, 1
      %p199 = por %p197, %p198
      %p201 = scmp.ne.s32.totalorder %s186, %s200
      %p202 = scmp.eq.s32.totalorder %s29, 0
      %p203 = por %p201, %p202
      %s205 = sadd.s32 %s204, 1
      %p208 = scmp.eq.s32.totalorder %s23, 1
      %p209 = scmp.ne.s32.totalorder %s204, %s206
      %p210 = scmp.eq.s32.totalorder %s23, 0
      %p211 = por %p209, %p210
      %p212 = scmp.ne.s32.totalorder %s204, %s206
      %p213 = scmp.eq.s32.totalorder %s28, 1
      %p214 = por %p212, %p213
      %p215 = scmp.ne.s32.totalorder %s206, %s207
      %p216 = scmp.eq.s32.totalorder %s28, 0
      %p217 = por %p215, %p216
      %p218 = scmp.ne.s32.totalorder %s206, %s207
      %p219 = scmp.eq.s32.totalorder %s29, 1
      %p220 = por %p218, %p219
      %p222 = scmp.ne.s32.totalorder %s207, %s221
      %p223 = scmp.eq.s32.totalorder %s29, 0
      %p224 = por %p222, %p223
      %s225 = ssub.s32 %s23, %s30
      %p226 = scmp.eq.s32.totalorder %s225, 0
      %s228 = sadd.s32 %s227, 1
      %s229 = scalar_select %p226, %s227, %s228
      %p232 = pneg %p226
      %p233 = scmp.eq.s32.totalorder %s23, 1
      %p234 = por %p232, %p233
      %p235 = scmp.ne.s32.totalorder %s227, %s230
      %p236 = scmp.eq.s32.totalorder %s23, 0
      %p237 = por %p235, %p236
      %p238 = scmp.ne.s32.totalorder %s227, %s230
      %p239 = scmp.eq.s32.totalorder %s28, 1
      %p240 = por %p238, %p239
      %p241 = scmp.ne.s32.totalorder %s230, %s231
      %p242 = scmp.eq.s32.totalorder %s28, 0
      %p243 = por %p241, %p242
      %p244 = scmp.ne.s32.totalorder %s230, %s231
      %p245 = scmp.eq.s32.totalorder %s29, 1
      %p246 = por %p244, %p245
      %p248 = scmp.ne.s32.totalorder %s231, %s247
      %p249 = scmp.eq.s32.totalorder %s29, 0
      %p250 = por %p248, %p249
      %p251 = scmp.le.s32.totalorder 1, %s23
      %p252 = scmp.lt.s32.totalorder %s23, 3
      %p253 = pnand %p251, %p252
      %p254 = pneg %p253
      // Predicated region
      $region9: #{tpu_custom_call.1} parent=5 // pred_check
        _
      $region10: #{tpu_custom_call.1} parent=5 // pred_check_branch
        %256 = sbr.rel (%p253) target = $region12
      $region11: #{tpu_custom_call.1} parent=5 // pred_region
        %s257 = ssub.s32 %s23, 1
        // Predicated region
        $region13: #{tpu_custom_call.1} parent=11 // pred_check
          %p258 = pneg %p70
        $region14: #{tpu_custom_call.1} parent=11 // pred_check_branch
          %260 = sbr.rel (%p258) target = $region16
        $region15: #{tpu_custom_call.1} parent=11 // pred_region
          %s262 = ssub.s32 1536, 1536
          %263 = vsyncadd [#allocation6], %s262
          %s264 = sshll.u32 [#allocation5], 4
          %s265 = int_to_ptr.vmem [resolvable:$true] %s264
          %270 = dma.hbm_to_vmem [thread:$0]  %s1, 1536, %s265, [#allocation6], 64, 64, 4
        $region16: #{tpu_custom_call.1} parent=11 // pred_fallthru
          _
        // Predicated region
        $region17: #{tpu_custom_call.1} parent=11 // pred_check
          %p271 = pneg %p91
        $region18: #{tpu_custom_call.1} parent=11 // pred_check_branch
          %273 = sbr.rel (%p271) target = $region20
        $region19: #{tpu_custom_call.1} parent=11 // pred_region
          _
        $region20: #{tpu_custom_call.1} parent=11 // pred_fallthru
          _
        // Predicated region
        $region21: #{tpu_custom_call.1} parent=11 // pred_check
          %p274 = pneg %p112
        $region22: #{tpu_custom_call.1} parent=11 // pred_check_branch
          %276 = sbr.rel (%p274) target = $region24
        $region23: #{tpu_custom_call.1} parent=11 // pred_region
          _
        $region24: #{tpu_custom_call.1} parent=11 // pred_fallthru
          _
        // Predicated region
        $region25: #{tpu_custom_call.1} parent=11 // pred_check
          %p277 = pneg %p133
        $region26: #{tpu_custom_call.1} parent=11 // pred_check_branch
          %279 = sbr.rel (%p277) target = $region28
        $region27: #{tpu_custom_call.1} parent=11 // pred_region
          _
        $region28: #{tpu_custom_call.1} parent=11 // pred_fallthru
          _
        // Predicated region
        $region29: #{tpu_custom_call.1} parent=11 // pred_check
          %p280 = pneg %p154
        $region30: #{tpu_custom_call.1} parent=11 // pred_check_branch
          %282 = sbr.rel (%p280) target = $region32
        $region31: #{tpu_custom_call.1} parent=11 // pred_region
          %s284 = ssub.s32 4096, 4096
          %285 = vsyncadd [#allocation6], %s284
          %s286 = sshll.u32 [#allocation7], 4
          %s287 = int_to_ptr.vmem [resolvable:$true] %s286
          %292 = dma.hbm_to_vmem [thread:$0]  %s5, 4096, %s287, [#allocation6], 256, 256, 16
        $region32: #{tpu_custom_call.1} parent=11 // pred_fallthru
          _
        // Predicated region
        $region33: #{tpu_custom_call.1} parent=11 // pred_check
          %p293 = pneg %p175
        $region34: #{tpu_custom_call.1} parent=11 // pred_check_branch
          %295 = sbr.rel (%p293) target = $region36
        $region35: #{tpu_custom_call.1} parent=11 // pred_region
          _
        $region36: #{tpu_custom_call.1} parent=11 // pred_fallthru
          _
        // Predicated region
        $region37: #{tpu_custom_call.1} parent=11 // pred_check
          %p296 = pneg %p196
        $region38: #{tpu_custom_call.1} parent=11 // pred_check_branch
          %298 = sbr.rel (%p296) target = $region40
        $region39: #{tpu_custom_call.1} parent=11 // pred_region
          %s300 = ssub.s32 4096, 4096
          %301 = vsyncadd [#allocation9], %s300
          %s302 = sshll.u32 [#allocation8], 4
          %s303 = int_to_ptr.vmem [resolvable:$true] %s302
          %308 = dma.hbm_to_vmem [thread:$0]  %s7, 4096, %s303, [#allocation9], 64, 64, 4
        $region40: #{tpu_custom_call.1} parent=11 // pred_fallthru
          _
        // Predicated region
        $region41: #{tpu_custom_call.1} parent=11 // pred_check
          %p309 = pneg %p217
        $region42: #{tpu_custom_call.1} parent=11 // pred_check_branch
          %311 = sbr.rel (%p309) target = $region44
        $region43: #{tpu_custom_call.1} parent=11 // pred_region
          _
        $region44: #{tpu_custom_call.1} parent=11 // pred_fallthru
          _
      $region12: #{tpu_custom_call.1} parent=5 // pred_fallthru
        _
      %p312 = scmp.lt.s32.totalorder %s23, 2
      // Predicated region
      $region45: #{tpu_custom_call.1} parent=5 // pred_check
        %p313 = pneg %p312
      $region46: #{tpu_custom_call.1} parent=5 // pred_check_branch
        %315 = sbr.rel (%p313) target = $region48
      $region47: #{tpu_custom_call.1} parent=5 // pred_region
        // Predicated region
        $region49: #{tpu_custom_call.1} parent=47 // pred_check
          %p316 = pneg %p43
        $region50: #{tpu_custom_call.1} parent=47 // pred_check_branch
          %318 = sbr.rel (%p316) target = $region52
        $region51: #{tpu_custom_call.1} parent=47 // pred_region
          %s319 = sand.u32 %s33, 1
          %s320 = scalar_lea.sflag [#allocation3], %s319
          %s321 = sand.u32 %s33, 1
          %s322 = smul.addr %s321, 16
          %s323 = scalar_lea.vmem [#allocation2], %s322
          %s324 = smul.u32 2, %s23
          %s326 = ssub.s32 256, 256
          %327 = vsyncadd %s320, %s326
          %s328 = smul.addr %s324, 2
          %s329 = smul.addr %s328, 64
          %s330 = scalar_lea.hbm %s0, %s329
          %s331 = sshll.u32 %s323, 4
          %s332 = int_to_ptr.vmem [resolvable:$true] %s331
          %337 = dma.hbm_to_vmem [thread:$0]  %s330, 256, %s332, %s320, 128, 128, 8
        $region52: #{tpu_custom_call.1} parent=47 // pred_fallthru
          _
      $region48: #{tpu_custom_call.1} parent=5 // pred_fallthru
        _
      %p338 = scmp.le.s32.totalorder 1, %s23
      %p339 = scmp.lt.s32.totalorder %s23, 3
      %p340 = pnand %p338, %p339
      %p341 = pneg %p340
      // Predicated region
      $region53: #{tpu_custom_call.1} parent=5 // pred_check
        _
      $region54: #{tpu_custom_call.1} parent=5 // pred_check_branch
        %343 = sbr.rel (%p340) target = $region56
      $region55: #{tpu_custom_call.1} parent=5 // pred_region
        %s344 = ssub.s32 %s23, 1
        %s345 = sand.u32 %s36, 1
        %s346 = scalar_lea.sflag [#allocation3], %s345
        %s347 = sand.u32 %s36, 1
        %s348 = smul.addr %s347, 16
        %s349 = scalar_lea.vmem [#allocation2], %s348
        // Predicated region
        $region57: #{tpu_custom_call.1} parent=55 // pred_check
          %p350 = pneg %p49
        $region58: #{tpu_custom_call.1} parent=55 // pred_check_branch
          %352 = sbr.rel (%p350) target = $region60
        $region59: #{tpu_custom_call.1} parent=55 // pred_region
          %353 = dma.done %s346, 256
        $region60: #{tpu_custom_call.1} parent=55 // pred_fallthru
          _
        // Predicated region
        $region61: #{tpu_custom_call.1} parent=55 // pred_check
          %p354 = pneg %p70
        $region62: #{tpu_custom_call.1} parent=55 // pred_check_branch
          %356 = sbr.rel (%p354) target = $region64
        $region63: #{tpu_custom_call.1} parent=55 // pred_region
          %357 = dma.done [#allocation6], 1536
        $region64: #{tpu_custom_call.1} parent=55 // pred_fallthru
          _
        // Predicated region
        $region65: #{tpu_custom_call.1} parent=55 // pred_check
          %p358 = pneg %p154
        $region66: #{tpu_custom_call.1} parent=55 // pred_check_branch
          %360 = sbr.rel (%p358) target = $region68
        $region67: #{tpu_custom_call.1} parent=55 // pred_region
          %361 = dma.done [#allocation6], 4096
        $region68: #{tpu_custom_call.1} parent=55 // pred_fallthru
          _
        // Predicated region
        $region69: #{tpu_custom_call.1} parent=55 // pred_check
          %p362 = pneg %p196
        $region70: #{tpu_custom_call.1} parent=55 // pred_check_branch
          %364 = sbr.rel (%p362) target = $region72
        $region71: #{tpu_custom_call.1} parent=55 // pred_region
          %365 = dma.done [#allocation9], 4096
        $region72: #{tpu_custom_call.1} parent=55 // pred_fallthru
          _
        %s366 = sand.u32 %s36, 1
        %s367 = scalar_lea.sflag [#allocation3], %s366
        %s368 = sand.u32 %s36, 1
        %s369 = smul.addr %s368, 16
        %s370 = scalar_lea.vmem [#allocation2], %s369
        %p371 = pneg %p49
        %p372 = pneg %p46
        %p373 = pneg %p70
        %p374 = pneg %p67
        %p375 = pneg %p91
        %p376 = pneg %p88
        %p377 = pneg %p112
        %p378 = pneg %p109
        %p379 = pneg %p133
        %p380 = pneg %p130
        %p381 = pneg %p154
        %p382 = pneg %p151
        %p383 = pneg %p175
        %p384 = pneg %p172
        %p385 = pneg %p196
        %p386 = pneg %p193
        %p387 = pneg %p217
        %p388 = pneg %p214
        %p389 = pneg %p243
        %p390 = pneg %p240
        %s391 = sand.u32 %s230, 1
        %s392 = scalar_lea.sflag [#allocation4], %s391
        %s393 = sand.u32 %s230, 1
        %s394 = smul.addr %s393, 8
        %s395 = scalar_lea.vmem [#allocation10], %s394
        %s396 = smul.u32 2, %s28
        %s397 = smul.u32 2, %s28
        %v403 = vld [vmem:[%s349] sm:$0xff]
        %v404 = vld [vmem:[%s349 + $0x8] sm:$0xff]
        %v405 = vld [vmem:[#allocation5] sm:$0xf]
        %v406 = vld [vmem:[#allocation5 + $0x4] sm:$0xf]
        %v407 = vld [vmem:[#allocation5 + $0x8] sm:$0xf]
        %v408 = vld [vmem:[#allocation5 + $0xc] sm:$0xf]
        %v409 = vld [vmem:[#allocation5 + $0x10] sm:$0xf]
        %v410 = vld [vmem:[#allocation5 + $0x14] sm:$0xf]
        %v411 = vld [vmem:[#allocation5 + $0x18] sm:$0xf]
        %v412 = vld [vmem:[#allocation5 + $0x1c] sm:$0xf]
        %v413 = vld [vmem:[#allocation5 + $0x20] sm:$0xf]
        %v414 = vld [vmem:[#allocation5 + $0x24] sm:$0xf]
        %v415 = vld [vmem:[#allocation5 + $0x28] sm:$0xf]
        %v416 = vld [vmem:[#allocation5 + $0x2c] sm:$0xf]
        %v417 = vld [vmem:[#allocation5 + $0x30] sm:$0xf]
        %v418 = vld [vmem:[#allocation5 + $0x34] sm:$0xf]
        %v419 = vld [vmem:[#allocation5 + $0x38] sm:$0xf]
        %v420 = vld [vmem:[#allocation5 + $0x3c] sm:$0xf]
        %v421 = vld [vmem:[#allocation5 + $0x40] sm:$0xf]
        %v422 = vld [vmem:[#allocation5 + $0x44] sm:$0xf]
        %v423 = vld [vmem:[#allocation5 + $0x48] sm:$0xf]
        %v424 = vld [vmem:[#allocation5 + $0x4c] sm:$0xf]
        %v425 = vld [vmem:[#allocation5 + $0x50] sm:$0xf]
        %v426 = vld [vmem:[#allocation5 + $0x54] sm:$0xf]
        %v427 = vld [vmem:[#allocation5 + $0x58] sm:$0xf]
        %v428 = vld [vmem:[#allocation5 + $0x5c] sm:$0xf]
        %v429 = vld [vmem:[%s2] sm:$0x1]
        %v431 = vlaneseq
        %v432 = vshrl.u32 %v431, 7
        %v433 = vsub.s32 0, %v432
        %v434 = vrot.slane %v429, %v433
        %v438 = vunpack.c.l.b16 %v403
        %v439 = vunpack.c.h.b16 %v403
        %v440 = vunpack.c.l.b16 %v404
        %v441 = vunpack.c.h.b16 %v404
        %v442 = vpack.c.b16 %v440, %v438
        %v443 = vpack.c.b16 %v441, %v439
        %v469 = vunpack.c.l.b16 %v405
        %v470 = vunpack.c.l.b16 %v406
        %v471 = vunpack.c.l.b16 %v407
        %v472 = vunpack.c.l.b16 %v408
        %v473 = vunpack.c.l.b16 %v409
        %v474 = vunpack.c.l.b16 %v410
        %v475 = vunpack.c.l.b16 %v411
        %v476 = vunpack.c.l.b16 %v412
        %v477 = vunpack.c.l.b16 %v413
        %v478 = vunpack.c.l.b16 %v414
        %v479 = vunpack.c.l.b16 %v415
        %v480 = vunpack.c.l.b16 %v416
        %v481 = vunpack.c.l.b16 %v417
        %v482 = vunpack.c.l.b16 %v418
        %v483 = vunpack.c.l.b16 %v419
        %v484 = vunpack.c.l.b16 %v420
        %v485 = vunpack.c.l.b16 %v421
        %v486 = vunpack.c.l.b16 %v422
        %v487 = vunpack.c.l.b16 %v423
        %v488 = vunpack.c.l.b16 %v424
        %v489 = vunpack.c.l.b16 %v425
        %v490 = vunpack.c.l.b16 %v426
        %v491 = vunpack.c.l.b16 %v427
        %v492 = vunpack.c.l.b16 %v428
        %v493 = vpack.c.b16 %v470, %v469
        %v494 = vpack.c.b16 %v472, %v471
        %v495 = vpack.c.b16 %v474, %v473
        %v496 = vpack.c.b16 %v476, %v475
        %v497 = vpack.c.b16 %v478, %v477
        %v498 = vpack.c.b16 %v480, %v479
        %v499 = vpack.c.b16 %v482, %v481
        %v500 = vpack.c.b16 %v484, %v483
        %v501 = vpack.c.b16 %v486, %v485
        %v502 = vpack.c.b16 %v488, %v487
        %v503 = vpack.c.b16 %v490, %v489
        %v504 = vpack.c.b16 %v492, %v491
        %vm517 = vcmask 523264
        %v519 = vsel %vm517, %v443, 0
        %521 = vmatprep.subr.bf16.mxu0 0
        %522 = vmatpush1.bf16.msra.mxu0 %v493
        %523 = vmatprep.subr.bf16.mxu0 0
        %524 = vmatpush1.bf16.msra.mxu0 %v494
        %525 = vmatprep.subr.bf16.mxu0 0
        %526 = vmatpush1.bf16.msra.mxu0 %v495
        %527 = vmatprep.subr.bf16.mxu0 0
        %528 = vmatpush1.bf16.msra.mxu0 %v496
        %529 = vmatprep.subr.bf16.mxu0 0
        %530 = vmatpush1.bf16.msra.mxu0 %v497
        %531 = vmatprep.subr.bf16.mxu0 0
        %532 = vmatpush1.bf16.msra.mxu0 %v498
        %533 = vmatprep.subr.bf16.mxu0 0
        %534 = vmatpush1.bf16.msra.mxu0 %v499
        %535 = vmatprep.subr.bf16.mxu0 0
        %536 = vmatpush1.bf16.msra.mxu0 %v500
        %537 = vmatprep.subr.bf16.mxu0 0
        %538 = vmatpush1.bf16.msra.mxu0 %v501
        %539 = vmatprep.subr.bf16.mxu0 0
        %540 = vmatpush1.bf16.msra.mxu0 %v502
        %541 = vmatprep.subr.bf16.mxu0 0
        %542 = vmatpush1.bf16.msra.mxu0 %v503
        %543 = vmatprep.subr.bf16.mxu0 0
        %544 = vmatpush1.bf16.msra.mxu0 %v504
        %545 = vmatprep.subr.bf16.mxu0 0
        %546 = vmatpush1.bf16.msra.mxu0 0
        %547 = vmatprep.subr.bf16.mxu0 0
        %548 = vmatpush1.bf16.msra.mxu0 0
        %549 = vmatprep.subr.bf16.mxu0 0
        %550 = vmatpush1.bf16.msra.mxu0 0
        %551 = vmatprep.subr.bf16.mxu0 0
        %552 = vmatpush1.bf16.msra.mxu0 0
        %553 = vmatprep.mubr.bf16.mxu0 %v519
        %554 = vmatmul.mubr.bf16.gmra.mrb[0].mxu0 %v442
        %v555 = vpop.f32.mrb[0].mxu0
        %v556 = vadd.f32 %v434, %v555
        %v557 = vpop.f32.mrb[0].mxu0
        %v558 = vpop.f32.mrb[0].mxu0
        %v559 = vadd.f32 %v434, %v558
        %v560 = vpop.f32.mrb[0].mxu0
        %561 = vdwg.mxu0
        %562 = vadd.xlane.f32.xlu0 %v556
        %v563 = vpop.xlane.xlu0 %562
        %564 = vadd.xlane.f32.xlu0 %v559
        %v565 = vpop.xlane.xlu0 %564
        %v566 = vrcp.pop 128.0
        %v567 = vmul.f32 %v563, %v566
        %v568 = vmul.f32 %v565, %v566
        %v569 = vsub.f32 %v556, %v567
        %v570 = vsub.f32 %v559, %v568
        %v571 = vmul.f32 %v569, %v569
        %v572 = vmul.f32 %v570, %v570
        %573 = vadd.xlane.f32.xlu0 %v571
        %v574 = vpop.xlane.xlu0 %573
        %575 = vadd.xlane.f32.xlu0 %v572
        %v576 = vpop.xlane.xlu0 %575
        %v577 = vmul.f32 %v574, %v566
        %v578 = vmul.f32 %v576, %v566
        %v579 = vadd.f32 %v577, 1e-06
        %v580 = vadd.f32 %v578, 1e-06
        %v581 = vrsqrt.pop %v579
        %v582 = vrsqrt.pop %v580
        %v583 = vmul.f32 %v569, %v581
        %v584 = vmul.f32 %v570, %v582
        %v585 = vld [vmem:[%s3] sm:$0x1]
        %v587 = vlaneseq
        %v588 = vshrl.u32 %v587, 7
        %v589 = vsub.s32 0, %v588
        %v590 = vrot.slane %v585, %v589
        %v592 = vmul.f32 %v583, %v590
        %v593 = vmul.f32 %v584, %v590
        %v594 = vld [vmem:[%s4] sm:$0x1]
        %v596 = vlaneseq
        %v597 = vshrl.u32 %v596, 7
        %v598 = vsub.s32 0, %v597
        %v599 = vrot.slane %v594, %v598
        %v601 = vadd.f32 %v592, %v599
        %v602 = vadd.f32 %v593, %v599
        %v603 = vpack.c.bf16 %v602, %v601
        %v604 = vld [vmem:[#allocation7] sm:$0xff]
        %v605 = vld [vmem:[#allocation7 + $0x8] sm:$0xff]
        %v606 = vld [vmem:[#allocation7 + $0x10] sm:$0xff]
        %v607 = vld [vmem:[#allocation7 + $0x18] sm:$0xff]
        %v608 = vld [vmem:[#allocation7 + $0x20] sm:$0xff]
        %v609 = vld [vmem:[#allocation7 + $0x28] sm:$0xff]
        %v610 = vld [vmem:[#allocation7 + $0x30] sm:$0xff]
        %v611 = vld [vmem:[#allocation7 + $0x38] sm:$0xff]
        %v612 = vld [vmem:[#allocation7 + $0x40] sm:$0xff]
        %v613 = vld [vmem:[#allocation7 + $0x48] sm:$0xff]
        %v614 = vld [vmem:[#allocation7 + $0x50] sm:$0xff]
        %v615 = vld [vmem:[#allocation7 + $0x58] sm:$0xff]
        %v616 = vld [vmem:[#allocation7 + $0x60] sm:$0xff]
        %v617 = vld [vmem:[#allocation7 + $0x68] sm:$0xff]
        %v618 = vld [vmem:[#allocation7 + $0x70] sm:$0xff]
        %v619 = vld [vmem:[#allocation7 + $0x78] sm:$0xff]
        %v620 = vld [vmem:[#allocation7 + $0x80] sm:$0xff]
        %v621 = vld [vmem:[#allocation7 + $0x88] sm:$0xff]
        %v622 = vld [vmem:[#allocation7 + $0x90] sm:$0xff]
        %v623 = vld [vmem:[#allocation7 + $0x98] sm:$0xff]
        %v624 = vld [vmem:[#allocation7 + $0xa0] sm:$0xff]
        %v625 = vld [vmem:[#allocation7 + $0xa8] sm:$0xff]
        %v626 = vld [vmem:[#allocation7 + $0xb0] sm:$0xff]
        %v627 = vld [vmem:[#allocation7 + $0xb8] sm:$0xff]
        %v628 = vld [vmem:[#allocation7 + $0xc0] sm:$0xff]
        %v629 = vld [vmem:[#allocation7 + $0xc8] sm:$0xff]
        %v630 = vld [vmem:[#allocation7 + $0xd0] sm:$0xff]
        %v631 = vld [vmem:[#allocation7 + $0xd8] sm:$0xff]
        %v632 = vld [vmem:[#allocation7 + $0xe0] sm:$0xff]
        %v633 = vld [vmem:[#allocation7 + $0xe8] sm:$0xff]
        %v634 = vld [vmem:[#allocation7 + $0xf0] sm:$0xff]
        %v635 = vld [vmem:[#allocation7 + $0xf8] sm:$0xff]
        %v636 = vld [vmem:[%s6] sm:$0xf]
        %v638 = vlaneseq
        %v639 = vshrl.u32 %v638, 7
        %v640 = vsub.s32 0, %v639
        %v641 = vrot.slane %v636, %v640
        %v642 = vlaneseq
        %v643 = vshrl.u32 %v642, 7
        %v644 = vsub.s32 1, %v643
        %v645 = vrot.slane %v636, %v644
        %v646 = vlaneseq
        %v647 = vshrl.u32 %v646, 7
        %v648 = vsub.s32 2, %v647
        %v649 = vrot.slane %v636, %v648
        %v650 = vlaneseq
        %v651 = vshrl.u32 %v650, 7
        %v652 = vsub.s32 3, %v651
        %v653 = vrot.slane %v636, %v652
        %v690 = vunpack.c.l.b16 %v604
        %v691 = vunpack.c.h.b16 %v604
        %v692 = vunpack.c.l.b16 %v605
        %v693 = vunpack.c.h.b16 %v605
        %v694 = vunpack.c.l.b16 %v606
        %v695 = vunpack.c.h.b16 %v606
        %v696 = vunpack.c.l.b16 %v607
        %v697 = vunpack.c.h.b16 %v607
        %v698 = vunpack.c.l.b16 %v608
        %v699 = vunpack.c.h.b16 %v608
        %v700 = vunpack.c.l.b16 %v609
        %v701 = vunpack.c.h.b16 %v609
        %v702 = vunpack.c.l.b16 %v610
        %v703 = vunpack.c.h.b16 %v610
        %v704 = vunpack.c.l.b16 %v611
        %v705 = vunpack.c.h.b16 %v611
        %v706 = vunpack.c.l.b16 %v612
        %v707 = vunpack.c.h.b16 %v612
        %v708 = vunpack.c.l.b16 %v613
        %v709 = vunpack.c.h.b16 %v613
        %v710 = vunpack.c.l.b16 %v614
        %v711 = vunpack.c.h.b16 %v614
        %v712 = vunpack.c.l.b16 %v615
        %v713 = vunpack.c.h.b16 %v615
        %v714 = vunpack.c.l.b16 %v616
        %v715 = vunpack.c.h.b16 %v616
        %v716 = vunpack.c.l.b16 %v617
        %v717 = vunpack.c.h.b16 %v617
        %v718 = vunpack.c.l.b16 %v618
        %v719 = vunpack.c.h.b16 %v618
        %v720 = vunpack.c.l.b16 %v619
        %v721 = vunpack.c.h.b16 %v619
        %v722 = vunpack.c.l.b16 %v620
        %v723 = vunpack.c.h.b16 %v620
        %v724 = vunpack.c.l.b16 %v621
        %v725 = vunpack.c.h.b16 %v621
        %v726 = vunpack.c.l.b16 %v622
        %v727 = vunpack.c.h.b16 %v622
        %v728 = vunpack.c.l.b16 %v623
        %v729 = vunpack.c.h.b16 %v623
        %v730 = vunpack.c.l.b16 %v624
        %v731 = vunpack.c.h.b16 %v624
        %v732 = vunpack.c.l.b16 %v625
        %v733 = vunpack.c.h.b16 %v625
        %v734 = vunpack.c.l.b16 %v626
        %v735 = vunpack.c.h.b16 %v626
        %v736 = vunpack.c.l.b16 %v627
        %v737 = vunpack.c.h.b16 %v627
        %v738 = vunpack.c.l.b16 %v628
        %v739 = vunpack.c.h.b16 %v628
        %v740 = vunpack.c.l.b16 %v629
        %v741 = vunpack.c.h.b16 %v629
        %v742 = vunpack.c.l.b16 %v630
        %v743 = vunpack.c.h.b16 %v630
        %v744 = vunpack.c.l.b16 %v631
        %v745 = vunpack.c.h.b16 %v631
        %v746 = vunpack.c.l.b16 %v632
        %v747 = vunpack.c.h.b16 %v632
        %v748 = vunpack.c.l.b16 %v633
        %v749 = vunpack.c.h.b16 %v633
        %v750 = vunpack.c.l.b16 %v634
        %v751 = vunpack.c.h.b16 %v634
        %v752 = vunpack.c.l.b16 %v635
        %v753 = vunpack.c.h.b16 %v635
        %v754 = vpack.c.b16 %v694, %v690
        %v755 = vpack.c.b16 %v695, %v691
        %v756 = vpack.c.b16 %v696, %v692
        %v757 = vpack.c.b16 %v697, %v693
        %v758 = vpack.c.b16 %v702, %v698
        %v759 = vpack.c.b16 %v703, %v699
        %v760 = vpack.c.b16 %v704, %v700
        %v761 = vpack.c.b16 %v705, %v701
        %v762 = vpack.c.b16 %v710, %v706
        %v763 = vpack.c.b16 %v711, %v707
        %v764 = vpack.c.b16 %v712, %v708
        %v765 = vpack.c.b16 %v713, %v709
        %v766 = vpack.c.b16 %v718, %v714
        %v767 = vpack.c.b16 %v719, %v715
        %v768 = vpack.c.b16 %v720, %v716
        %v769 = vpack.c.b16 %v721, %v717
        %v770 = vpack.c.b16 %v726, %v722
        %v771 = vpack.c.b16 %v727, %v723
        %v772 = vpack.c.b16 %v728, %v724
        %v773 = vpack.c.b16 %v729, %v725
        %v774 = vpack.c.b16 %v734, %v730
        %v775 = vpack.c.b16 %v735, %v731
        %v776 = vpack.c.b16 %v736, %v732
        %v777 = vpack.c.b16 %v737, %v733
        %v778 = vpack.c.b16 %v742, %v738
        %v779 = vpack.c.b16 %v743, %v739
        %v780 = vpack.c.b16 %v744, %v740
        %v781 = vpack.c.b16 %v745, %v741
        %v782 = vpack.c.b16 %v750, %v746
        %v783 = vpack.c.b16 %v751, %v747
        %v784 = vpack.c.b16 %v752, %v748
        %v785 = vpack.c.b16 %v753, %v749
        %818 = vmatprep.subr.bf16.mxu0 %v755
        %819 = vmatpush1.bf16.msra.mxu0 %v754
        %820 = vmatprep.subr.bf16.mxu0 %v759
        %821 = vmatpush1.bf16.msra.mxu0 %v758
        %822 = vmatprep.subr.bf16.mxu0 %v763
        %823 = vmatpush1.bf16.msra.mxu0 %v762
        %824 = vmatprep.subr.bf16.mxu0 %v767
        %825 = vmatpush1.bf16.msra.mxu0 %v766
        %826 = vmatprep.subr.bf16.mxu0 %v771
        %827 = vmatpush1.bf16.msra.mxu0 %v770
        %828 = vmatprep.subr.bf16.mxu0 %v775
        %829 = vmatpush1.bf16.msra.mxu0 %v774
        %830 = vmatprep.subr.bf16.mxu0 %v779
        %831 = vmatpush1.bf16.msra.mxu0 %v778
        %832 = vmatprep.subr.bf16.mxu0 %v783
        %833 = vmatpush1.bf16.msra.mxu0 %v782
        %834 = vmatprep.subr.bf16.mxu0 0
        %835 = vmatpush1.bf16.msra.mxu0 0
        %836 = vmatprep.subr.bf16.mxu0 0
        %837 = vmatpush1.bf16.msra.mxu0 0
        %838 = vmatprep.subr.bf16.mxu0 0
        %839 = vmatpush1.bf16.msra.mxu0 0
        %840 = vmatprep.subr.bf16.mxu0 0
        %841 = vmatpush1.bf16.msra.mxu0 0
        %842 = vmatprep.subr.bf16.mxu0 0
        %843 = vmatpush1.bf16.msra.mxu0 0
        %844 = vmatprep.subr.bf16.mxu0 0
        %845 = vmatpush1.bf16.msra.mxu0 0
        %846 = vmatprep.subr.bf16.mxu0 0
        %847 = vmatpush1.bf16.msra.mxu0 0
        %848 = vmatprep.subr.bf16.mxu0 0
        %849 = vmatpush1.bf16.msra.mxu0 0
        %850 = vmatprep.mubr.bf16.mxu0 0
        %851 = vmatmul.mubr.bf16.gmra.mrb[0].mxu0 %v603
        %v852 = vpop.f32.mrb[0].mxu0
        %v853 = vadd.f32 %v641, %v852
        %v854 = vpop.f32.mrb[0].mxu0
        %v855 = vadd.f32 %v645, %v854
        %v856 = vpop.f32.mrb[0].mxu0
        %v857 = vadd.f32 %v641, %v856
        %v858 = vpop.f32.mrb[0].mxu0
        %v859 = vadd.f32 %v645, %v858
        %860 = vdwg.mxu0
        %861 = vmatprep.subr.bf16.mxu0 %v757
        %862 = vmatpush1.bf16.msra.mxu0 %v756
        %863 = vmatprep.subr.bf16.mxu0 %v761
        %864 = vmatpush1.bf16.msra.mxu0 %v760
        %865 = vmatprep.subr.bf16.mxu0 %v765
        %866 = vmatpush1.bf16.msra.mxu0 %v764
        %867 = vmatprep.subr.bf16.mxu0 %v769
        %868 = vmatpush1.bf16.msra.mxu0 %v768
        %869 = vmatprep.subr.bf16.mxu0 %v773
        %870 = vmatpush1.bf16.msra.mxu0 %v772
        %871 = vmatprep.subr.bf16.mxu0 %v777
        %872 = vmatpush1.bf16.msra.mxu0 %v776
        %873 = vmatprep.subr.bf16.mxu0 %v781
        %874 = vmatpush1.bf16.msra.mxu0 %v780
        %875 = vmatprep.subr.bf16.mxu0 %v785
        %876 = vmatpush1.bf16.msra.mxu0 %v784
        %877 = vmatprep.subr.bf16.mxu0 0
        %878 = vmatpush1.bf16.msra.mxu0 0
        %879 = vmatprep.subr.bf16.mxu0 0
        %880 = vmatpush1.bf16.msra.mxu0 0
        %881 = vmatprep.subr.bf16.mxu0 0
        %882 = vmatpush1.bf16.msra.mxu0 0
        %883 = vmatprep.subr.bf16.mxu0 0
        %884 = vmatpush1.bf16.msra.mxu0 0
        %885 = vmatprep.subr.bf16.mxu0 0
        %886 = vmatpush1.bf16.msra.mxu0 0
        %887 = vmatprep.subr.bf16.mxu0 0
        %888 = vmatpush1.bf16.msra.mxu0 0
        %889 = vmatprep.subr.bf16.mxu0 0
        %890 = vmatpush1.bf16.msra.mxu0 0
        %891 = vmatprep.subr.bf16.mxu0 0
        %892 = vmatpush1.bf16.msra.mxu0 0
        %893 = vmatprep.mubr.bf16.mxu0 0
        %894 = vmatmul.mubr.bf16.gmra.mrb[0].mxu0 %v603
        %v895 = vpop.f32.mrb[0].mxu0
        %v896 = vadd.f32 %v649, %v895
        %v897 = vpop.f32.mrb[0].mxu0
        %v898 = vadd.f32 %v653, %v897
        %v899 = vpop.f32.mrb[0].mxu0
        %v900 = vadd.f32 %v649, %v899
        %v901 = vpop.f32.mrb[0].mxu0
        %v902 = vadd.f32 %v653, %v901
        %903 = vdwg.mxu0
        %v904 = vpack.c.bf16 %v857, %v853
        %v905 = vpack.c.bf16 %v859, %v855
        %v906 = vpack.c.bf16 %v900, %v896
        %v907 = vpack.c.bf16 %v902, %v898
        %v908 = vmul.bf16 %v904, %v904
        %v909 = vmul.bf16 %v905, %v905
        %v910 = vmul.bf16 %v906, %v906
        %v911 = vmul.bf16 %v907, %v907
        %v912 = vmul.bf16 %v904, %v908
        %v913 = vmul.bf16 %v905, %v909
        %v914 = vmul.bf16 %v906, %v910
        %v915 = vmul.bf16 %v907, %v911
        %v916 = vmul.bf16 %v912, 1027030327
        %v917 = vmul.bf16 %v913, 1027030327
        %v918 = vmul.bf16 %v914, 1027030327
        %v919 = vmul.bf16 %v915, 1027030327
        %v920 = vadd.bf16 %v904, %v916
        %v921 = vadd.bf16 %v905, %v917
        %v922 = vadd.bf16 %v906, %v918
        %v923 = vadd.bf16 %v907, %v919
        %v924 = vmul.bf16 %v920, 1061961548
        %v925 = vmul.bf16 %v921, 1061961548
        %v926 = vmul.bf16 %v922, 1061961548
        %v927 = vmul.bf16 %v923, 1061961548
        %v928 = vtanh.bf16.pop %v924
        %v929 = vtanh.bf16.pop %v925
        %v930 = vtanh.bf16.pop %v926
        %v931 = vtanh.bf16.pop %v927
        %v932 = vadd.bf16 %v928, 1065369472
        %v933 = vadd.bf16 %v929, 1065369472
        %v934 = vadd.bf16 %v930, 1065369472
        %v935 = vadd.bf16 %v931, 1065369472
        %v936 = vmul.bf16 %v932, 1056980736
        %v937 = vmul.bf16 %v933, 1056980736
        %v938 = vmul.bf16 %v934, 1056980736
        %v939 = vmul.bf16 %v935, 1056980736
        %v940 = vmul.bf16 %v904, %v936
        %v941 = vmul.bf16 %v905, %v937
        %v942 = vmul.bf16 %v906, %v938
        %v943 = vmul.bf16 %v907, %v939
        %v944 = vld [vmem:[#allocation8] sm:$0xf]
        %v945 = vld [vmem:[#allocation8 + $0x4] sm:$0xf]
        %v946 = vld [vmem:[#allocation8 + $0x8] sm:$0xf]
        %v947 = vld [vmem:[#allocation8 + $0xc] sm:$0xf]
        %v948 = vld [vmem:[#allocation8 + $0x10] sm:$0xf]
        %v949 = vld [vmem:[#allocation8 + $0x14] sm:$0xf]
        %v950 = vld [vmem:[#allocation8 + $0x18] sm:$0xf]
        %v951 = vld [vmem:[#allocation8 + $0x1c] sm:$0xf]
        %v952 = vld [vmem:[#allocation8 + $0x20] sm:$0xf]
        %v953 = vld [vmem:[#allocation8 + $0x24] sm:$0xf]
        %v954 = vld [vmem:[#allocation8 + $0x28] sm:$0xf]
        %v955 = vld [vmem:[#allocation8 + $0x2c] sm:$0xf]
        %v956 = vld [vmem:[#allocation8 + $0x30] sm:$0xf]
        %v957 = vld [vmem:[#allocation8 + $0x34] sm:$0xf]
        %v958 = vld [vmem:[#allocation8 + $0x38] sm:$0xf]
        %v959 = vld [vmem:[#allocation8 + $0x3c] sm:$0xf]
        %v960 = vld [vmem:[#allocation8 + $0x40] sm:$0xf]
        %v961 = vld [vmem:[#allocation8 + $0x44] sm:$0xf]
        %v962 = vld [vmem:[#allocation8 + $0x48] sm:$0xf]
        %v963 = vld [vmem:[#allocation8 + $0x4c] sm:$0xf]
        %v964 = vld [vmem:[#allocation8 + $0x50] sm:$0xf]
        %v965 = vld [vmem:[#allocation8 + $0x54] sm:$0xf]
        %v966 = vld [vmem:[#allocation8 + $0x58] sm:$0xf]
        %v967 = vld [vmem:[#allocation8 + $0x5c] sm:$0xf]
        %v968 = vld [vmem:[#allocation8 + $0x60] sm:$0xf]
        %v969 = vld [vmem:[#allocation8 + $0x64] sm:$0xf]
        %v970 = vld [vmem:[#allocation8 + $0x68] sm:$0xf]
        %v971 = vld [vmem:[#allocation8 + $0x6c] sm:$0xf]
        %v972 = vld [vmem:[#allocation8 + $0x70] sm:$0xf]
        %v973 = vld [vmem:[#allocation8 + $0x74] sm:$0xf]
        %v974 = vld [vmem:[#allocation8 + $0x78] sm:$0xf]
        %v975 = vld [vmem:[#allocation8 + $0x7c] sm:$0xf]
        %v976 = vld [vmem:[#allocation8 + $0x80] sm:$0xf]
        %v977 = vld [vmem:[#allocation8 + $0x84] sm:$0xf]
        %v978 = vld [vmem:[#allocation8 + $0x88] sm:$0xf]
        %v979 = vld [vmem:[#allocation8 + $0x8c] sm:$0xf]
        %v980 = vld [vmem:[#allocation8 + $0x90] sm:$0xf]
        %v981 = vld [vmem:[#allocation8 + $0x94] sm:$0xf]
        %v982 = vld [vmem:[#allocation8 + $0x98] sm:$0xf]
        %v983 = vld [vmem:[#allocation8 + $0x9c] sm:$0xf]
        %v984 = vld [vmem:[#allocation8 + $0xa0] sm:$0xf]
        %v985 = vld [vmem:[#allocation8 + $0xa4] sm:$0xf]
        %v986 = vld [vmem:[#allocation8 + $0xa8] sm:$0xf]
        %v987 = vld [vmem:[#allocation8 + $0xac] sm:$0xf]
        %v988 = vld [vmem:[#allocation8 + $0xb0] sm:$0xf]
        %v989 = vld [vmem:[#allocation8 + $0xb4] sm:$0xf]
        %v990 = vld [vmem:[#allocation8 + $0xb8] sm:$0xf]
        %v991 = vld [vmem:[#allocation8 + $0xbc] sm:$0xf]
        %v992 = vld [vmem:[#allocation8 + $0xc0] sm:$0xf]
        %v993 = vld [vmem:[#allocation8 + $0xc4] sm:$0xf]
        %v994 = vld [vmem:[#allocation8 + $0xc8] sm:$0xf]
        %v995 = vld [vmem:[#allocation8 + $0xcc] sm:$0xf]
        %v996 = vld [vmem:[#allocation8 + $0xd0] sm:$0xf]
        %v997 = vld [vmem:[#allocation8 + $0xd4] sm:$0xf]
        %v998 = vld [vmem:[#allocation8 + $0xd8] sm:$0xf]
        %v999 = vld [vmem:[#allocation8 + $0xdc] sm:$0xf]
        %v1000 = vld [vmem:[#allocation8 + $0xe0] sm:$0xf]
        %v1001 = vld [vmem:[#allocation8 + $0xe4] sm:$0xf]
        %v1002 = vld [vmem:[#allocation8 + $0xe8] sm:$0xf]
        %v1003 = vld [vmem:[#allocation8 + $0xec] sm:$0xf]
        %v1004 = vld [vmem:[#allocation8 + $0xf0] sm:$0xf]
        %v1005 = vld [vmem:[#allocation8 + $0xf4] sm:$0xf]
        %v1006 = vld [vmem:[#allocation8 + $0xf8] sm:$0xf]
        %v1007 = vld [vmem:[#allocation8 + $0xfc] sm:$0xf]
        %v1008 = vld [vmem:[%s8] sm:$0x1]
        %v1010 = vlaneseq
        %v1011 = vshrl.u32 %v1010, 7
        %v1012 = vsub.s32 0, %v1011
        %v1013 = vrot.slane %v1008, %v1012
        %v1079 = vunpack.c.l.b16 %v944
        %v1080 = vunpack.c.l.b16 %v945
        %v1081 = vunpack.c.l.b16 %v946
        %v1082 = vunpack.c.l.b16 %v947
        %v1083 = vunpack.c.l.b16 %v948
        %v1084 = vunpack.c.l.b16 %v949
        %v1085 = vunpack.c.l.b16 %v950
        %v1086 = vunpack.c.l.b16 %v951
        %v1087 = vunpack.c.l.b16 %v952
        %v1088 = vunpack.c.l.b16 %v953
        %v1089 = vunpack.c.l.b16 %v954
        %v1090 = vunpack.c.l.b16 %v955
        %v1091 = vunpack.c.l.b16 %v956
        %v1092 = vunpack.c.l.b16 %v957
        %v1093 = vunpack.c.l.b16 %v958
        %v1094 = vunpack.c.l.b16 %v959
        %v1095 = vunpack.c.l.b16 %v960
        %v1096 = vunpack.c.l.b16 %v961
        %v1097 = vunpack.c.l.b16 %v962
        %v1098 = vunpack.c.l.b16 %v963
        %v1099 = vunpack.c.l.b16 %v964
        %v1100 = vunpack.c.l.b16 %v965
        %v1101 = vunpack.c.l.b16 %v966
        %v1102 = vunpack.c.l.b16 %v967
        %v1103 = vunpack.c.l.b16 %v968
        %v1104 = vunpack.c.l.b16 %v969
        %v1105 = vunpack.c.l.b16 %v970
        %v1106 = vunpack.c.l.b16 %v971
        %v1107 = vunpack.c.l.b16 %v972
        %v1108 = vunpack.c.l.b16 %v973
        %v1109 = vunpack.c.l.b16 %v974
        %v1110 = vunpack.c.l.b16 %v975
        %v1111 = vunpack.c.l.b16 %v976
        %v1112 = vunpack.c.l.b16 %v977
        %v1113 = vunpack.c.l.b16 %v978
        %v1114 = vunpack.c.l.b16 %v979
        %v1115 = vunpack.c.l.b16 %v980
        %v1116 = vunpack.c.l.b16 %v981
        %v1117 = vunpack.c.l.b16 %v982
        %v1118 = vunpack.c.l.b16 %v983
        %v1119 = vunpack.c.l.b16 %v984
        %v1120 = vunpack.c.l.b16 %v985
        %v1121 = vunpack.c.l.b16 %v986
        %v1122 = vunpack.c.l.b16 %v987
        %v1123 = vunpack.c.l.b16 %v988
        %v1124 = vunpack.c.l.b16 %v989
        %v1125 = vunpack.c.l.b16 %v990
        %v1126 = vunpack.c.l.b16 %v991
        %v1127 = vunpack.c.l.b16 %v992
        %v1128 = vunpack.c.l.b16 %v993
        %v1129 = vunpack.c.l.b16 %v994
        %v1130 = vunpack.c.l.b16 %v995
        %v1131 = vunpack.c.l.b16 %v996
        %v1132 = vunpack.c.l.b16 %v997
        %v1133 = vunpack.c.l.b16 %v998
        %v1134 = vunpack.c.l.b16 %v999
        %v1135 = vunpack.c.l.b16 %v1000
        %v1136 = vunpack.c.l.b16 %v1001
        %v1137 = vunpack.c.l.b16 %v1002
        %v1138 = vunpack.c.l.b16 %v1003
        %v1139 = vunpack.c.l.b16 %v1004
        %v1140 = vunpack.c.l.b16 %v1005
        %v1141 = vunpack.c.l.b16 %v1006
        %v1142 = vunpack.c.l.b16 %v1007
        %v1143 = vpack.c.b16 %v1080, %v1079
        %v1144 = vpack.c.b16 %v1082, %v1081
        %v1145 = vpack.c.b16 %v1084, %v1083
        %v1146 = vpack.c.b16 %v1086, %v1085
        %v1147 = vpack.c.b16 %v1088, %v1087
        %v1148 = vpack.c.b16 %v1090, %v1089
        %v1149 = vpack.c.b16 %v1092, %v1091
        %v1150 = vpack.c.b16 %v1094, %v1093
        %v1151 = vpack.c.b16 %v1096, %v1095
        %v1152 = vpack.c.b16 %v1098, %v1097
        %v1153 = vpack.c.b16 %v1100, %v1099
        %v1154 = vpack.c.b16 %v1102, %v1101
        %v1155 = vpack.c.b16 %v1104, %v1103
        %v1156 = vpack.c.b16 %v1106, %v1105
        %v1157 = vpack.c.b16 %v1108, %v1107
        %v1158 = vpack.c.b16 %v1110, %v1109
        %v1159 = vpack.c.b16 %v1112, %v1111
        %v1160 = vpack.c.b16 %v1114, %v1113
        %v1161 = vpack.c.b16 %v1116, %v1115
        %v1162 = vpack.c.b16 %v1118, %v1117
        %v1163 = vpack.c.b16 %v1120, %v1119
        %v1164 = vpack.c.b16 %v1122, %v1121
        %v1165 = vpack.c.b16 %v1124, %v1123
        %v1166 = vpack.c.b16 %v1126, %v1125
        %v1167 = vpack.c.b16 %v1128, %v1127
        %v1168 = vpack.c.b16 %v1130, %v1129
        %v1169 = vpack.c.b16 %v1132, %v1131
        %v1170 = vpack.c.b16 %v1134, %v1133
        %v1171 = vpack.c.b16 %v1136, %v1135
        %v1172 = vpack.c.b16 %v1138, %v1137
        %v1173 = vpack.c.b16 %v1140, %v1139
        %v1174 = vpack.c.b16 %v1142, %v1141
        %1207 = vmatprep.subr.bf16.mxu0 0
        %1208 = vmatpush1.bf16.msra.mxu0 %v1143
        %1209 = vmatprep.subr.bf16.mxu0 0
        %1210 = vmatpush1.bf16.msra.mxu0 %v1144
        %1211 = vmatprep.subr.bf16.mxu0 0
        %1212 = vmatpush1.bf16.msra.mxu0 %v1145
        %1213 = vmatprep.subr.bf16.mxu0 0
        %1214 = vmatpush1.bf16.msra.mxu0 %v1146
        %1215 = vmatprep.subr.bf16.mxu0 0
        %1216 = vmatpush1.bf16.msra.mxu0 %v1147
        %1217 = vmatprep.subr.bf16.mxu0 0
        %1218 = vmatpush1.bf16.msra.mxu0 %v1148
        %1219 = vmatprep.subr.bf16.mxu0 0
        %1220 = vmatpush1.bf16.msra.mxu0 %v1149
        %1221 = vmatprep.subr.bf16.mxu0 0
        %1222 = vmatpush1.bf16.msra.mxu0 %v1150
        %1223 = vmatprep.subr.bf16.mxu0 0
        %1224 = vmatpush1.bf16.msra.mxu0 %v1151
        %1225 = vmatprep.subr.bf16.mxu0 0
        %1226 = vmatpush1.bf16.msra.mxu0 %v1152
        %1227 = vmatprep.subr.bf16.mxu0 0
        %1228 = vmatpush1.bf16.msra.mxu0 %v1153
        %1229 = vmatprep.subr.bf16.mxu0 0
        %1230 = vmatpush1.bf16.msra.mxu0 %v1154
        %1231 = vmatprep.subr.bf16.mxu0 0
        %1232 = vmatpush1.bf16.msra.mxu0 %v1155
        %1233 = vmatprep.subr.bf16.mxu0 0
        %1234 = vmatpush1.bf16.msra.mxu0 %v1156
        %1235 = vmatprep.subr.bf16.mxu0 0
        %1236 = vmatpush1.bf16.msra.mxu0 %v1157
        %1237 = vmatprep.subr.bf16.mxu0 0
        %1238 = vmatpush1.bf16.msra.mxu0 %v1158
        %1239 = vmatprep.mubr.bf16.mxu0 %v941
        %1240 = vmatmul.mubr.bf16.gmra.mrb[0].mxu0 %v940
        %v1241 = vpop.f32.mrb[0].mxu0
        %v1242 = vadd.f32 %v1013, %v1241
        %v1243 = vpop.f32.mrb[0].mxu0
        %v1244 = vpop.f32.mrb[0].mxu0
        %v1245 = vadd.f32 %v1013, %v1244
        %v1246 = vpop.f32.mrb[0].mxu0
        %1247 = vdwg.mxu0
        %1248 = vmatprep.subr.bf16.mxu0 0
        %1249 = vmatpush1.bf16.msra.mxu0 %v1159
        %1250 = vmatprep.subr.bf16.mxu0 0
        %1251 = vmatpush1.bf16.msra.mxu0 %v1160
        %1252 = vmatprep.subr.bf16.mxu0 0
        %1253 = vmatpush1.bf16.msra.mxu0 %v1161
        %1254 = vmatprep.subr.bf16.mxu0 0
        %1255 = vmatpush1.bf16.msra.mxu0 %v1162
        %1256 = vmatprep.subr.bf16.mxu0 0
        %1257 = vmatpush1.bf16.msra.mxu0 %v1163
        %1258 = vmatprep.subr.bf16.mxu0 0
        %1259 = vmatpush1.bf16.msra.mxu0 %v1164
        %1260 = vmatprep.subr.bf16.mxu0 0
        %1261 = vmatpush1.bf16.msra.mxu0 %v1165
        %1262 = vmatprep.subr.bf16.mxu0 0
        %1263 = vmatpush1.bf16.msra.mxu0 %v1166
        %1264 = vmatprep.subr.bf16.mxu0 0
        %1265 = vmatpush1.bf16.msra.mxu0 %v1167
        %1266 = vmatprep.subr.bf16.mxu0 0
        %1267 = vmatpush1.bf16.msra.mxu0 %v1168
        %1268 = vmatprep.subr.bf16.mxu0 0
        %1269 = vmatpush1.bf16.msra.mxu0 %v1169
        %1270 = vmatprep.subr.bf16.mxu0 0
        %1271 = vmatpush1.bf16.msra.mxu0 %v1170
        %1272 = vmatprep.subr.bf16.mxu0 0
        %1273 = vmatpush1.bf16.msra.mxu0 %v1171
        %1274 = vmatprep.subr.bf16.mxu0 0
        %1275 = vmatpush1.bf16.msra.mxu0 %v1172
        %1276 = vmatprep.subr.bf16.mxu0 0
        %1277 = vmatpush1.bf16.msra.mxu0 %v1173
        %1278 = vmatprep.subr.bf16.mxu0 0
        %1279 = vmatpush1.bf16.msra.mxu0 %v1174
        %1280 = vmatprep.mubr.bf16.mxu0 %v943
        %1281 = vmatmul.mubr.bf16.gmra.mrb[0].mxu0 %v942
        %v1282 = vpop.f32.mrb[0].mxu0
        %v1283 = vadd.f32 %v1242, %v1282
        %v1284 = vpop.f32.mrb[0].mxu0
        %v1285 = vpop.f32.mrb[0].mxu0
        %v1286 = vadd.f32 %v1245, %v1285
        %v1287 = vpop.f32.mrb[0].mxu0
        %1288 = vdwg.mxu0
        %v1289 = vadd.f32 %v556, %v1283
        %v1290 = vadd.f32 %v559, %v1286
        %v1291 = vpack.c.bf16 %v1290, %v1289
        %v1293 = vunpack.c.l.b16 %v1291
        %v1294 = vunpack.c.h.b16 %v1291
        %v1295 = vpack.c.b16 %v1293, %v1293
        %v1296 = vpack.c.b16 %v1294, %v1294
        %1299 = vst [vmem:[%s395] sm:$0xf] %v1295
        %1300 = vst [vmem:[%s395 + $0x4] sm:$0xf] %v1296
        %s1301 = sand.u32 %s230, 1
        %s1302 = scalar_lea.sflag [#allocation4], %s1301
        %s1303 = sand.u32 %s230, 1
        %s1304 = smul.addr %s1303, 8
        %s1305 = scalar_lea.vmem [#allocation10], %s1304
        // Predicated region
        $region73: #{tpu_custom_call.1} parent=55 // pred_check
          %p1306 = pneg %p240
        $region74: #{tpu_custom_call.1} parent=55 // pred_check_branch
          %1308 = sbr.rel (%p1306) target = $region76
        $region75: #{tpu_custom_call.1} parent=55 // pred_region
          %s1309 = smul.u32 2, %s28
          %s1311 = ssub.s32 128, 128
          %1312 = vsyncadd %s1302, %s1311
          %s1313 = smul.addr %s1309, 64
          %s1314 = scalar_lea.hbm %s9, %s1313
          %s1315 = sshll.u32 %s1305, 4
          %s1316 = int_to_ptr.vmem [resolvable:$true] %s1315
          %1321 = dma.vmem_to_hbm [thread:$0]  %s1316, 128, %s1314, %s1302, 64, 64, 4
        $region76: #{tpu_custom_call.1} parent=55 // pred_fallthru
          _
      $region56: #{tpu_custom_call.1} parent=5 // pred_fallthru
        _
      %p1322 = scmp.le.s32.totalorder 2, %s23
      // Predicated region
      $region77: #{tpu_custom_call.1} parent=5 // pred_check
        %p1323 = pneg %p1322
      $region78: #{tpu_custom_call.1} parent=5 // pred_check_branch
        %1325 = sbr.rel (%p1323) target = $region80
      $region79: #{tpu_custom_call.1} parent=5 // pred_region
        %s1326 = ssub.s32 %s23, 2
        // Predicated region
        $region81: #{tpu_custom_call.1} parent=79 // pred_check
          %p1327 = pneg %p246
        $region82: #{tpu_custom_call.1} parent=79 // pred_check_branch
          %1329 = sbr.rel (%p1327) target = $region84
        $region83: #{tpu_custom_call.1} parent=79 // pred_region
          %s1330 = sand.u32 %s231, 1
          %s1331 = scalar_lea.sflag [#allocation4], %s1330
          %s1332 = sand.u32 %s231, 1
          %s1333 = smul.addr %s1332, 8
          %s1334 = scalar_lea.vmem [#allocation10], %s1333
          %1335 = dma.done %s1331, 128
        $region84: #{tpu_custom_call.1} parent=79 // pred_fallthru
          _
      $region80: #{tpu_custom_call.1} parent=5 // pred_fallthru
        _
    $region6: #{tpu_custom_call.1} parent=1 // loop_footer
      %s27 = sadd.s32 1, %s23
    $region7: #{tpu_custom_call.1} parent=1 // loop_footer_branch
      %22 = sbr.rel target = $region3
    $region8: #{tpu_custom_call.1} parent=1 // loop_exit
      _
    %1336 = vsyncpa [#allocation3], 1
    %s1337 = scalar_lea.sflag [#allocation3], 1
    %1338 = vsyncpa %s1337, 1
    %1339 = vsyncpa [#allocation6], 1
    %1340 = vsyncpa [#allocation9], 1
    %1341 = vsyncpa [#allocation4], 1
    %s1342 = scalar_lea.sflag [#allocation4], 1
    %1343 = vsyncpa %s1342, 1

</llo_original>
